<compile_context>
chip_gen: v6e
topology: v6e:2x2x1
jax: 0.10.0
libtpu: 0.0.40
codegen_flags: <defaults>
</compile_context>

<pallas_src>
import functools

import jax
import jax.numpy as jnp
from jax.experimental import pallas as pl
from jax.experimental.pallas import tpu as pltpu

LEAKY_SLOPE = 0.01  # nn.LeakyReLU default negative_slope


def _round_up(n, m):
    return ((n + m - 1) // m) * m


def fold_bn(gamma, beta, mean, var, eps=1e-5):
    """Per-feature (scale, shift) so that BN_eval(x) = x*scale + shift."""
    scale = gamma / jnp.sqrt(var + eps)
    shift = beta - mean * scale
    return scale, shift


def linear_block_kernel(x_ref, w_ref, t_ref, o_ref):
    """x_ref: (bm, Fp) f32; w_ref: (4, Fp, Fp) bf16 folded weights; t_ref: (4, 1, Fp) f32."""
    x = x_ref[...].astype(jnp.float32)

    def stage(h, i):
        # dense with bias+BN folded into (w, t)  ->  LeakyReLU.
        y = jnp.dot(h.astype(jnp.bfloat16), w_ref[i],
                    preferred_element_type=jnp.float32) + t_ref[i]
        return jnp.where(y >= 0.0, y, LEAKY_SLOPE * y)

    y = stage(x, 0)
    y = stage(y, 1)
    out1 = x + y
    y = stage(out1, 2)
    y = stage(y, 3)
    o_ref[...] = (out1 + y).astype(o_ref.dtype)
    # TODO(synk): training-mode dropout (stochastic) not implemented; eval-mode identity.


@functools.partial(jax.jit, static_argnames=("block_m",))
def linear_block(x, params, block_m=256):
    """x: (N, F) float32.  params: dict of per-layer weights / BN terms."""
    assert block_m % 8 == 0, "block_m must be a multiple of 8 (sublane tile)"
    N, F = x.shape
    Fp = _round_up(max(F, 128), 128)          # lane-dense feature dim
    bm = min(block_m, _round_up(N, 8))        # row tile (multiple of 8)
    Np = _round_up(N, bm)                     # pad rows instead of asserting N % bm == 0
    grid_m = Np // bm

    # ---- fold bias + BN scale/shift into the weights (small constant transform) ----
    w_list, t_list = [], []
    for i in (1, 2, 3, 4):
        s, t = fold_bn(params[f"g{i}"], params[f"beta{i}"],
                       params[f"mean{i}"], params[f"var{i}"])
        w = params[f"w{i}"] * s[None, :]               # (F_in, F_out), column-scaled
        tt = params[f"b{i}"] * s + t                   # (F,)
        w = jnp.pad(w, ((0, Fp - F), (0, Fp - F)))     # zero-pad -> exact
        tt = jnp.pad(tt, (0, Fp - F))
        w_list.append(w.astype(jnp.bfloat16))
        t_list.append(tt.astype(jnp.float32))
    w_all = jnp.stack(w_list)                          # (4, Fp, Fp) bf16
    t_all = jnp.stack(t_list)[:, None, :]              # (4, 1, Fp) f32

    x_p = jnp.pad(x.astype(jnp.float32), ((0, Np - N), (0, Fp - F)))

    x_spec = pl.BlockSpec((bm, Fp), lambda i: (i, 0))
    w_spec = pl.BlockSpec((4, Fp, Fp), lambda i: (0, 0, 0))
    t_spec = pl.BlockSpec((4, 1, Fp), lambda i: (0, 0, 0))

    # VMEM budget (pipeline double-buffers every spec): x + out + weights + shifts.
    vmem_bytes = 2 * (bm * Fp * 4) * 2 + 2 * (4 * Fp * Fp * 2 + 4 * Fp * 4)
    vmem_limit = int(min(max(vmem_bytes + (8 << 20), 16 << 20), 48 << 20))  # v7x-safe

    out_p = pl.pallas_call(
        linear_block_kernel,
        out_shape=jax.ShapeDtypeStruct((Np, Fp), x.dtype),
        grid_spec=pltpu.PrefetchScalarGridSpec(
            num_scalar_prefetch=0,
            grid=(grid_m,),
            in_specs=[x_spec, w_spec, t_spec],
            out_specs=x_spec,
        ),
        compiler_params=pltpu.CompilerParams(
            dimension_semantics=("parallel",),
            vmem_limit_bytes=vmem_limit,
        ),
    )(x_p, w_all, t_all)

    return out_p[:N, :F]


def reference(x, params):
    """Plain-JAX reference with matching numerics (bf16 matmul operands, f32 accum)."""
    def stage(h, i):
        s, t = fold_bn(params[f"g{i}"], params[f"beta{i}"],
                       params[f"mean{i}"], params[f"var{i}"])
        w = (params[f"w{i}"] * s[None, :]).astype(jnp.bfloat16)
        tt = params[f"b{i}"] * s + t
        y = jnp.dot(h.astype(jnp.bfloat16), w,
                    preferred_element_type=jnp.float32) + tt
        return jnp.where(y >= 0.0, y, LEAKY_SLOPE * y)

    y = stage(x.astype(jnp.float32), 1)
    y = stage(y, 2)
    out1 = x + y
    y = stage(out1, 3)
    y = stage(y, 4)
    return out1 + y


def make_params(key, F):
    params = {}
    keys = jax.random.split(key, 24)
    k = iter(keys)
    for i in (1, 2, 3, 4):
        # nn.Linear weight (out, in) -> stored transposed (in, out) for x @ W
        w = jax.random.normal(next(k), (F, F), jnp.float32) * (1.0 / jnp.sqrt(F))
        params[f"w{i}"] = w.T
        params[f"b{i}"] = jax.random.normal(next(k), (F,), jnp.float32) * 0.1
        params[f"g{i}"] = 1.0 + 0.1 * jax.random.normal(next(k), (F,), jnp.float32)
        params[f"beta{i}"] = 0.1 * jax.random.normal(next(k), (F,), jnp.float32)
        params[f"mean{i}"] = 0.1 * jax.random.normal(next(k), (F,), jnp.float32)
        params[f"var{i}"] = jnp.abs(jax.random.normal(next(k), (F,), jnp.float32)) + 0.5
    return params


if __name__ == "__main__":
    key = jax.random.PRNGKey(0)
    kx, kp, kx2 = jax.random.split(key, 3)

    F = 32  # linear_size
    params = make_params(kp, F)

    # Small shape matching the module spec (batch=8, linear_size=32).
    x_small = jax.random.normal(kx, (8, F), jnp.float32)
    out_small = jax.block_until_ready(linear_block(x_small, params))
    ref_small = reference(x_small, params)
    assert out_small.shape == (8, F)
    assert jnp.allclose(out_small, ref_small, atol=5e-3, rtol=5e-3), "mismatch (small)"

    # Larger, non-divisible batch: exercises multi-step grid + row padding path.
    x_big = jax.random.normal(kx2, (1000, F), jnp.float32)
    out_big = jax.block_until_ready(linear_block(x_big, params, block_m=256))
    ref_big = reference(x_big, params)
    assert out_big.shape == (1000, F)
    assert jnp.allclose(out_big, ref_big, atol=5e-3, rtol=5e-3), "mismatch (big)"

    print("KERNEL_OK")
</pallas_src>

<mosaic_0001>
module attributes {stable_mosaic.version = 11 : i64} {
  func.func @linear_block_kernel(%arg0: i32, %arg1: memref<8x128xf32, #tpu.memory_space<vmem>>, %arg2: memref<4x128x128xbf16, #tpu.memory_space<vmem>>, %arg3: memref<4x1x128xf32, #tpu.memory_space<vmem>>, %arg4: memref<8x128xf32, #tpu.memory_space<vmem>>) attributes {dimension_semantics = [#tpu.dimension_semantics<parallel>], iteration_bounds = array<i64: 1>, scalar_prefetch = 0 : i64, scratch_operands = 0 : i64, tpu.core_type = #tpu.core_type<tc>, window_params = [{transform_indices = @transform_0, window_bounds = array<i64: 8, 128>}, {pipeline_mode = #tpu.pipeline_mode<synchronous>, transform_indices = @transform_1, window_bounds = array<i64: 4, 128, 128>}, {pipeline_mode = #tpu.pipeline_mode<synchronous>, transform_indices = @transform_2, window_bounds = array<i64: 4, 1, 128>}, {transform_indices = @transform_3, window_bounds = array<i64: 8, 128>}]} {
    %c0 = arith.constant 0 : index
    %c0_0 = arith.constant 0 : index
    %0 = vector.load %arg1[%c0, %c0_0] : memref<8x128xf32, #tpu.memory_space<vmem>>, vector<8x128xf32>
    %1 = arith.truncf %0 : vector<8x128xf32> to vector<8x128xbf16>
    %c0_1 = arith.constant 0 : index
    %c0_2 = arith.constant 0 : index
    %c0_3 = arith.constant 0 : index
    %2 = vector.load %arg2[%c0_1, %c0_2, %c0_3] : memref<4x128x128xbf16, #tpu.memory_space<vmem>>, vector<1x128x128xbf16>
    %3 = vector.shape_cast %2 : vector<1x128x128xbf16> to vector<128x128xbf16>
    %cst = arith.constant dense<0.000000e+00> : vector<8x128xf32>
    %4 = tpu.matmul %1, %3, %cst {dimension_numbers = #tpu.dot_dimension_numbers<[1], [0], [0], [1], [0, 0, 1, 1], [], []>} : vector<8x128xbf16>, vector<128x128xbf16>, vector<8x128xf32> -> vector<8x128xf32>
    %c0_4 = arith.constant 0 : index
    %c0_5 = arith.constant 0 : index
    %c0_6 = arith.constant 0 : index
    %5 = vector.load %arg3[%c0_4, %c0_5, %c0_6] : memref<4x1x128xf32, #tpu.memory_space<vmem>>, vector<1x1x128xf32>
    %6 = vector.shape_cast %5 : vector<1x1x128xf32> to vector<1x128xf32>
    %7 = vector.broadcast %6 : vector<1x128xf32> to vector<8x128xf32>
    %8 = arith.addf %4, %7 : vector<8x128xf32>
    %cst_7 = arith.constant 0.000000e+00 : f32
    %9 = vector.broadcast %cst_7 : f32 to vector<8x128xf32>
    %10 = arith.cmpf oge, %8, %9 : vector<8x128xf32>
    %cst_8 = arith.constant 0.00999999977 : f32
    %11 = vector.broadcast %cst_8 : f32 to vector<8x128xf32>
    %12 = arith.mulf %11, %8 : vector<8x128xf32>
    %13 = arith.select %10, %8, %12 : vector<8x128xi1>, vector<8x128xf32>
    %14 = arith.truncf %13 : vector<8x128xf32> to vector<8x128xbf16>
    %c1 = arith.constant 1 : index
    %c0_9 = arith.constant 0 : index
    %c0_10 = arith.constant 0 : index
    %15 = vector.load %arg2[%c1, %c0_9, %c0_10] : memref<4x128x128xbf16, #tpu.memory_space<vmem>>, vector<1x128x128xbf16>
    %16 = vector.shape_cast %15 : vector<1x128x128xbf16> to vector<128x128xbf16>
    %cst_11 = arith.constant dense<0.000000e+00> : vector<8x128xf32>
    %17 = tpu.matmul %14, %16, %cst_11 {dimension_numbers = #tpu.dot_dimension_numbers<[1], [0], [0], [1], [0, 0, 1, 1], [], []>} : vector<8x128xbf16>, vector<128x128xbf16>, vector<8x128xf32> -> vector<8x128xf32>
    %c1_12 = arith.constant 1 : index
    %c0_13 = arith.constant 0 : index
    %c0_14 = arith.constant 0 : index
    %18 = vector.load %arg3[%c1_12, %c0_13, %c0_14] : memref<4x1x128xf32, #tpu.memory_space<vmem>>, vector<1x1x128xf32>
    %19 = vector.shape_cast %18 : vector<1x1x128xf32> to vector<1x128xf32>
    %20 = vector.broadcast %19 : vector<1x128xf32> to vector<8x128xf32>
    %21 = arith.addf %17, %20 : vector<8x128xf32>
    %cst_15 = arith.constant 0.000000e+00 : f32
    %22 = vector.broadcast %cst_15 : f32 to vector<8x128xf32>
    %23 = arith.cmpf oge, %21, %22 : vector<8x128xf32>
    %cst_16 = arith.constant 0.00999999977 : f32
    %24 = vector.broadcast %cst_16 : f32 to vector<8x128xf32>
    %25 = arith.mulf %24, %21 : vector<8x128xf32>
    %26 = arith.select %23, %21, %25 : vector<8x128xi1>, vector<8x128xf32>
    %27 = arith.addf %0, %26 : vector<8x128xf32>
    %28 = arith.truncf %27 : vector<8x128xf32> to vector<8x128xbf16>
    %c2 = arith.constant 2 : index
    %c0_17 = arith.constant 0 : index
    %c0_18 = arith.constant 0 : index
    %29 = vector.load %arg2[%c2, %c0_17, %c0_18] : memref<4x128x128xbf16, #tpu.memory_space<vmem>>, vector<1x128x128xbf16>
    %30 = vector.shape_cast %29 : vector<1x128x128xbf16> to vector<128x128xbf16>
    %cst_19 = arith.constant dense<0.000000e+00> : vector<8x128xf32>
    %31 = tpu.matmul %28, %30, %cst_19 {dimension_numbers = #tpu.dot_dimension_numbers<[1], [0], [0], [1], [0, 0, 1, 1], [], []>} : vector<8x128xbf16>, vector<128x128xbf16>, vector<8x128xf32> -> vector<8x128xf32>
    %c2_20 = arith.constant 2 : index
    %c0_21 = arith.constant 0 : index
    %c0_22 = arith.constant 0 : index
    %32 = vector.load %arg3[%c2_20, %c0_21, %c0_22] : memref<4x1x128xf32, #tpu.memory_space<vmem>>, vector<1x1x128xf32>
    %33 = vector.shape_cast %32 : vector<1x1x128xf32> to vector<1x128xf32>
    %34 = vector.broadcast %33 : vector<1x128xf32> to vector<8x128xf32>
    %35 = arith.addf %31, %34 : vector<8x128xf32>
    %cst_23 = arith.constant 0.000000e+00 : f32
    %36 = vector.broadcast %cst_23 : f32 to vector<8x128xf32>
    %37 = arith.cmpf oge, %35, %36 : vector<8x128xf32>
    %cst_24 = arith.constant 0.00999999977 : f32
    %38 = vector.broadcast %cst_24 : f32 to vector<8x128xf32>
    %39 = arith.mulf %38, %35 : vector<8x128xf32>
    %40 = arith.select %37, %35, %39 : vector<8x128xi1>, vector<8x128xf32>
    %41 = arith.truncf %40 : vector<8x128xf32> to vector<8x128xbf16>
    %c3 = arith.constant 3 : index
    %c0_25 = arith.constant 0 : index
    %c0_26 = arith.constant 0 : index
    %42 = vector.load %arg2[%c3, %c0_25, %c0_26] : memref<4x128x128xbf16, #tpu.memory_space<vmem>>, vector<1x128x128xbf16>
    %43 = vector.shape_cast %42 : vector<1x128x128xbf16> to vector<128x128xbf16>
    %cst_27 = arith.constant dense<0.000000e+00> : vector<8x128xf32>
    %44 = tpu.matmul %41, %43, %cst_27 {dimension_numbers = #tpu.dot_dimension_numbers<[1], [0], [0], [1], [0, 0, 1, 1], [], []>} : vector<8x128xbf16>, vector<128x128xbf16>, vector<8x128xf32> -> vector<8x128xf32>
    %c3_28 = arith.constant 3 : index
    %c0_29 = arith.constant 0 : index
    %c0_30 = arith.constant 0 : index
    %45 = vector.load %arg3[%c3_28, %c0_29, %c0_30] : memref<4x1x128xf32, #tpu.memory_space<vmem>>, vector<1x1x128xf32>
    %46 = vector.shape_cast %45 : vector<1x1x128xf32> to vector<1x128xf32>
    %47 = vector.broadcast %46 : vector<1x128xf32> to vector<8x128xf32>
    %48 = arith.addf %44, %47 : vector<8x128xf32>
    %cst_31 = arith.constant 0.000000e+00 : f32
    %49 = vector.broadcast %cst_31 : f32 to vector<8x128xf32>
    %50 = arith.cmpf oge, %48, %49 : vector<8x128xf32>
    %cst_32 = arith.constant 0.00999999977 : f32
    %51 = vector.broadcast %cst_32 : f32 to vector<8x128xf32>
    %52 = arith.mulf %51, %48 : vector<8x128xf32>
    %53 = arith.select %50, %48, %52 : vector<8x128xi1>, vector<8x128xf32>
    %54 = arith.addf %27, %53 : vector<8x128xf32>
    %c0_33 = arith.constant 0 : index
    %c0_34 = arith.constant 0 : index
    %55 = vector.load %arg4[%c0_33, %c0_34] : memref<8x128xf32, #tpu.memory_space<vmem>>, vector<8x128xf32>
    tpu.vector_store %arg4[%c0_33, %c0_34], %54 {strides = array<i32>} : memref<8x128xf32, #tpu.memory_space<vmem>>, vector<8x128xf32>,
    return
  }
  func.func @transform_0(%arg0: i32) -> (i32, i32) {
    %c0_i32 = arith.constant 0 : i32
    %c0_i32_0 = arith.constant 0 : i32
    return %arg0, %c0_i32 : i32, i32
  }
  func.func @transform_1(%arg0: i32) -> (i32, i32, i32) {
    %c0_i32 = arith.constant 0 : i32
    %c0_i32_0 = arith.constant 0 : i32
    %c0_i32_1 = arith.constant 0 : i32
    %c0_i32_2 = arith.constant 0 : i32
    return %c0_i32, %c0_i32_0, %c0_i32_1 : i32, i32, i32
  }
  func.func @transform_2(%arg0: i32) -> (i32, i32, i32) {
    %c0_i32 = arith.constant 0 : i32
    %c0_i32_0 = arith.constant 0 : i32
    %c0_i32_1 = arith.constant 0 : i32
    %c0_i32_2 = arith.constant 0 : i32
    return %c0_i32, %c0_i32_0, %c0_i32_1 : i32, i32, i32
  }
  func.func @transform_3(%arg0: i32) -> (i32, i32) {
    %c0_i32 = arith.constant 0 : i32
    %c0_i32_0 = arith.constant 0 : i32
    return %arg0, %c0_i32 : i32, i32
  }
}

</mosaic_0001>

<llo_original>
// kernel: linear_block.1
$region0: #{linear_block.1}
  #allocation0 [shape = 'u32[]', space=smem, size = 0x4, offset = 0x4, fixed_abs, tag = 'smem constant byte address 0x4 - core index']
  #allocation1 [shape = 'u32[144,128]{1,0:T(1,128)}', space=vmem, size = 0x12000, scoped, tag = 'internal scratch']
  %s0 = inlined_call_operand.vmem [shape: f32[8,128], index: 0, kind: input, shape index: {}]
  %s1 = inlined_call_operand.vmem [shape: bf16[4,128,128], index: 1, kind: input, shape index: {}]
  %s2 = inlined_call_operand.vmem [shape: f32[4,1,128], index: 2, kind: input, shape index: {}]
  %s3 = inlined_call_operand.hbm [shape: f32[8,128], index: 3, kind: output, shape index: {}]
  %s4 = sld [smem:[#allocation0]]
  $region22: #{linear_block.1} parent=0
    _
  %s6 = ssub.s32 1, %s4
  %s7 = scalar_select 0, %s6, %s4
  $region1: #{linear_block.1} parent=0
    #allocation2 [shape = 'u8[4096]{0}', space=vmem, size = 0x1000, scoped, tag = 'output window, operand 0, single buffered']
    #allocation3 [shape = 's32[1]{0}', space=sflag, size = 0x4, scoped, tag = 'scoped memory for linear_block.1']
    %8 = vsyncpa [#allocation3], 0
    // Predicated region
    $region2: #{linear_block.1} parent=1 // pred_check
      _
    $region3: #{linear_block.1} parent=1 // pred_check_branch
      %10 = sbr.rel (0) target = $region5
    $region4: #{linear_block.1} parent=1 // pred_region
      _
    $region5: #{linear_block.1} parent=1 // pred_fallthru
      _
    // Predicated region
    $region6: #{linear_block.1} parent=1 // pred_check
      _
    $region7: #{linear_block.1} parent=1 // pred_check_branch
      %12 = sbr.rel (0) target = $region9
    $region8: #{linear_block.1} parent=1 // pred_region
      _
    $region9: #{linear_block.1} parent=1 // pred_fallthru
      _
    // Predicated region
    $region10: #{linear_block.1} parent=1 // pred_check
      _
    $region11: #{linear_block.1} parent=1 // pred_check_branch
      %14 = sbr.rel (0) target = $region13
    $region12: #{linear_block.1} parent=1 // pred_region
      _
    $region13: #{linear_block.1} parent=1 // pred_fallthru
      _
    %v16 = vld [vmem:[%s0] sm:$0xff]
    %v17 = vpack.c.bf16 %v16, %v16
    %v18 = vld [vmem:[%s1] sm:$0xf]
    %v19 = vld [vmem:[%s1 + $0x4] sm:$0xf]
    %v20 = vld [vmem:[%s1 + $0x8] sm:$0xf]
    %v21 = vld [vmem:[%s1 + $0xc] sm:$0xf]
    %v22 = vld [vmem:[%s1 + $0x10] sm:$0xf]
    %v23 = vld [vmem:[%s1 + $0x14] sm:$0xf]
    %v24 = vld [vmem:[%s1 + $0x18] sm:$0xf]
    %v25 = vld [vmem:[%s1 + $0x1c] sm:$0xf]
    %v26 = vld [vmem:[%s1 + $0x20] sm:$0xf]
    %v27 = vld [vmem:[%s1 + $0x24] sm:$0xf]
    %v28 = vld [vmem:[%s1 + $0x28] sm:$0xf]
    %v29 = vld [vmem:[%s1 + $0x2c] sm:$0xf]
    %v30 = vld [vmem:[%s1 + $0x30] sm:$0xf]
    %v31 = vld [vmem:[%s1 + $0x34] sm:$0xf]
    %v32 = vld [vmem:[%s1 + $0x38] sm:$0xf]
    %v33 = vld [vmem:[%s1 + $0x3c] sm:$0xf]
    %v34 = vld [vmem:[%s2] sm:$0x1]
    %v36 = vlaneseq
    %v37 = vshrl.u32 %v36, 7
    %v38 = vsub.s32 0, %v37
    %v39 = vrot.slane %v34, %v38
    %v57 = vunpack.c.l.b16 %v18
    %v58 = vunpack.c.l.b16 %v19
    %v59 = vunpack.c.l.b16 %v20
    %v60 = vunpack.c.l.b16 %v21
    %v61 = vunpack.c.l.b16 %v22
    %v62 = vunpack.c.l.b16 %v23
    %v63 = vunpack.c.l.b16 %v24
    %v64 = vunpack.c.l.b16 %v25
    %v65 = vunpack.c.l.b16 %v26
    %v66 = vunpack.c.l.b16 %v27
    %v67 = vunpack.c.l.b16 %v28
    %v68 = vunpack.c.l.b16 %v29
    %v69 = vunpack.c.l.b16 %v30
    %v70 = vunpack.c.l.b16 %v31
    %v71 = vunpack.c.l.b16 %v32
    %v72 = vunpack.c.l.b16 %v33
    %v73 = vpack.c.b16 %v58, %v57
    %v74 = vpack.c.b16 %v60, %v59
    %v75 = vpack.c.b16 %v62, %v61
    %v76 = vpack.c.b16 %v64, %v63
    %v77 = vpack.c.b16 %v66, %v65
    %v78 = vpack.c.b16 %v68, %v67
    %v79 = vpack.c.b16 %v70, %v69
    %v80 = vpack.c.b16 %v72, %v71
    %89 = vmatprep.subr.bf16.mxu0 0
    %90 = vmatpush1.bf16.msra.mxu0 %v80
    %91 = vmatprep.subr.bf16.mxu0 0
    %92 = vmatpush1.bf16.msra.mxu0 %v79
    %93 = vmatprep.subr.bf16.mxu0 0
    %94 = vmatpush1.bf16.msra.mxu0 %v78
    %95 = vmatprep.subr.bf16.mxu0 0
    %96 = vmatpush1.bf16.msra.mxu0 %v77
    %97 = vmatprep.subr.bf16.mxu0 0
    %98 = vmatpush1.bf16.msra.mxu0 %v76
    %99 = vmatprep.subr.bf16.mxu0 0
    %100 = vmatpush1.bf16.msra.mxu0 %v75
    %101 = vmatprep.subr.bf16.mxu0 0
    %102 = vmatpush1.bf16.msra.mxu0 %v74
    %103 = vmatprep.subr.bf16.mxu0 0
    %104 = vmatpush1.bf16.msra.mxu0 %v73
    %105 = vmatprep.subr.bf16.mxu0 0
    %106 = vmatpush2.bf16.msra.mxu0 0
    %107 = vmatprep.subr.bf16.mxu0 0
    %108 = vmatpush2.bf16.msra.mxu0 0
    %109 = vmatprep.subr.bf16.mxu0 0
    %110 = vmatpush2.bf16.msra.mxu0 0
    %111 = vmatprep.subr.bf16.mxu0 0
    %112 = vmatpush2.bf16.msra.mxu0 0
    %113 = vmatprep.subr.bf16.mxu0 0
    %114 = vmatpush2.bf16.msra.mxu0 0
    %115 = vmatprep.subr.bf16.mxu0 0
    %116 = vmatpush2.bf16.msra.mxu0 0
    %117 = vmatprep.subr.bf16.mxu0 0
    %118 = vmatpush2.bf16.msra.mxu0 0
    %119 = vmatprep.subr.bf16.mxu0 0
    %120 = vmatpush2.bf16.msra.mxu0 0
    %121 = vmatprep.mubr.bf16.mxu0 0
    %122 = vmatmul.mubr.bf16.gmra.mxu0 %v17
    %v123 = vpop.f32.mrf.mxu0
    %v124 = vadd.f32 %v39, %v123
    %v125 = vpop.f32.mrf.mxu0
    %v126 = vpop.f32.mrf.mxu0
    %v127 = vpop.f32.mrf.mxu0
    %128 = vdwg.mxu0
    %vm129 = vcmp.ge.f32.partialorder %v124, 0.0
    %v130 = vmul.f32 %v124, 0.01
    %v131 = vsel %vm129, %v124, %v130
    %v132 = vpack.c.bf16 %v131, %v131
    %s133 = scalar_lea.vmem %s1, 64
    %v134 = vld [vmem:[%s133] sm:$0xf]
    %v135 = vld [vmem:[%s133 + $0x4] sm:$0xf]
    %v136 = vld [vmem:[%s133 + $0x8] sm:$0xf]
    %v137 = vld [vmem:[%s133 + $0xc] sm:$0xf]
    %v138 = vld [vmem:[%s133 + $0x10] sm:$0xf]
    %v139 = vld [vmem:[%s133 + $0x14] sm:$0xf]
    %v140 = vld [vmem:[%s133 + $0x18] sm:$0xf]
    %v141 = vld [vmem:[%s133 + $0x1c] sm:$0xf]
    %v142 = vld [vmem:[%s133 + $0x20] sm:$0xf]
    %v143 = vld [vmem:[%s133 + $0x24] sm:$0xf]
    %v144 = vld [vmem:[%s133 + $0x28] sm:$0xf]
    %v145 = vld [vmem:[%s133 + $0x2c] sm:$0xf]
    %v146 = vld [vmem:[%s133 + $0x30] sm:$0xf]
    %v147 = vld [vmem:[%s133 + $0x34] sm:$0xf]
    %v148 = vld [vmem:[%s133 + $0x38] sm:$0xf]
    %v149 = vld [vmem:[%s133 + $0x3c] sm:$0xf]
    %s150 = scalar_lea.vmem %s2, 1
    %v151 = vld [vmem:[%s150] sm:$0x1]
    %v153 = vlaneseq
    %v154 = vshrl.u32 %v153, 7
    %v155 = vsub.s32 0, %v154
    %v156 = vrot.slane %v151, %v155
    %v174 = vunpack.c.l.b16 %v134
    %v175 = vunpack.c.l.b16 %v135
    %v176 = vunpack.c.l.b16 %v136
    %v177 = vunpack.c.l.b16 %v137
    %v178 = vunpack.c.l.b16 %v138
    %v179 = vunpack.c.l.b16 %v139
    %v180 = vunpack.c.l.b16 %v140
    %v181 = vunpack.c.l.b16 %v141
    %v182 = vunpack.c.l.b16 %v142
    %v183 = vunpack.c.l.b16 %v143
    %v184 = vunpack.c.l.b16 %v144
    %v185 = vunpack.c.l.b16 %v145
    %v186 = vunpack.c.l.b16 %v146
    %v187 = vunpack.c.l.b16 %v147
    %v188 = vunpack.c.l.b16 %v148
    %v189 = vunpack.c.l.b16 %v149
    %v190 = vpack.c.b16 %v175, %v174
    %v191 = vpack.c.b16 %v177, %v176
    %v192 = vpack.c.b16 %v179, %v178
    %v193 = vpack.c.b16 %v181, %v180
    %v194 = vpack.c.b16 %v183, %v182
    %v195 = vpack.c.b16 %v185, %v184
    %v196 = vpack.c.b16 %v187, %v186
    %v197 = vpack.c.b16 %v189, %v188
    %206 = vmatprep.subr.bf16.mxu0 0
    %207 = vmatpush1.bf16.msra.mxu0 %v197
    %208 = vmatprep.subr.bf16.mxu0 0
    %209 = vmatpush1.bf16.msra.mxu0 %v196
    %210 = vmatprep.subr.bf16.mxu0 0
    %211 = vmatpush1.bf16.msra.mxu0 %v195
    %212 = vmatprep.subr.bf16.mxu0 0
    %213 = vmatpush1.bf16.msra.mxu0 %v194
    %214 = vmatprep.subr.bf16.mxu0 0
    %215 = vmatpush1.bf16.msra.mxu0 %v193
    %216 = vmatprep.subr.bf16.mxu0 0
    %217 = vmatpush1.bf16.msra.mxu0 %v192
    %218 = vmatprep.subr.bf16.mxu0 0
    %219 = vmatpush1.bf16.msra.mxu0 %v191
    %220 = vmatprep.subr.bf16.mxu0 0
    %221 = vmatpush1.bf16.msra.mxu0 %v190
    %222 = vmatprep.subr.bf16.mxu0 0
    %223 = vmatpush2.bf16.msra.mxu0 0
    %224 = vmatprep.subr.bf16.mxu0 0
    %225 = vmatpush2.bf16.msra.mxu0 0
    %226 = vmatprep.subr.bf16.mxu0 0
    %227 = vmatpush2.bf16.msra.mxu0 0
    %228 = vmatprep.subr.bf16.mxu0 0
    %229 = vmatpush2.bf16.msra.mxu0 0
    %230 = vmatprep.subr.bf16.mxu0 0
    %231 = vmatpush2.bf16.msra.mxu0 0
    %232 = vmatprep.subr.bf16.mxu0 0
    %233 = vmatpush2.bf16.msra.mxu0 0
    %234 = vmatprep.subr.bf16.mxu0 0
    %235 = vmatpush2.bf16.msra.mxu0 0
    %236 = vmatprep.subr.bf16.mxu0 0
    %237 = vmatpush2.bf16.msra.mxu0 0
    %238 = vmatprep.mubr.bf16.mxu0 0
    %239 = vmatmul.mubr.bf16.gmra.mxu0 %v132
    %v240 = vpop.f32.mrf.mxu0
    %v241 = vadd.f32 %v156, %v240
    %v242 = vpop.f32.mrf.mxu0
    %v243 = vpop.f32.mrf.mxu0
    %v244 = vpop.f32.mrf.mxu0
    %245 = vdwg.mxu0
    %vm246 = vcmp.ge.f32.partialorder %v241, 0.0
    %v247 = vmul.f32 %v241, 0.01
    %v248 = vsel %vm246, %v241, %v247
    %v249 = vadd.f32 %v16, %v248
    %v250 = vpack.c.bf16 %v249, %v249
    %s251 = scalar_lea.vmem %s1, 128
    %v252 = vld [vmem:[%s251] sm:$0xf]
    %v253 = vld [vmem:[%s251 + $0x4] sm:$0xf]
    %v254 = vld [vmem:[%s251 + $0x8] sm:$0xf]
    %v255 = vld [vmem:[%s251 + $0xc] sm:$0xf]
    %v256 = vld [vmem:[%s251 + $0x10] sm:$0xf]
    %v257 = vld [vmem:[%s251 + $0x14] sm:$0xf]
    %v258 = vld [vmem:[%s251 + $0x18] sm:$0xf]
    %v259 = vld [vmem:[%s251 + $0x1c] sm:$0xf]
    %v260 = vld [vmem:[%s251 + $0x20] sm:$0xf]
    %v261 = vld [vmem:[%s251 + $0x24] sm:$0xf]
    %v262 = vld [vmem:[%s251 + $0x28] sm:$0xf]
    %v263 = vld [vmem:[%s251 + $0x2c] sm:$0xf]
    %v264 = vld [vmem:[%s251 + $0x30] sm:$0xf]
    %v265 = vld [vmem:[%s251 + $0x34] sm:$0xf]
    %v266 = vld [vmem:[%s251 + $0x38] sm:$0xf]
    %v267 = vld [vmem:[%s251 + $0x3c] sm:$0xf]
    %s268 = scalar_lea.vmem %s2, 2
    %v269 = vld [vmem:[%s268] sm:$0x1]
    %v271 = vlaneseq
    %v272 = vshrl.u32 %v271, 7
    %v273 = vsub.s32 0, %v272
    %v274 = vrot.slane %v269, %v273
    %v292 = vunpack.c.l.b16 %v252
    %v293 = vunpack.c.l.b16 %v253
    %v294 = vunpack.c.l.b16 %v254
    %v295 = vunpack.c.l.b16 %v255
    %v296 = vunpack.c.l.b16 %v256
    %v297 = vunpack.c.l.b16 %v257
    %v298 = vunpack.c.l.b16 %v258
    %v299 = vunpack.c.l.b16 %v259
    %v300 = vunpack.c.l.b16 %v260
    %v301 = vunpack.c.l.b16 %v261
    %v302 = vunpack.c.l.b16 %v262
    %v303 = vunpack.c.l.b16 %v263
    %v304 = vunpack.c.l.b16 %v264
    %v305 = vunpack.c.l.b16 %v265
    %v306 = vunpack.c.l.b16 %v266
    %v307 = vunpack.c.l.b16 %v267
    %v308 = vpack.c.b16 %v293, %v292
    %v309 = vpack.c.b16 %v295, %v294
    %v310 = vpack.c.b16 %v297, %v296
    %v311 = vpack.c.b16 %v299, %v298
    %v312 = vpack.c.b16 %v301, %v300
    %v313 = vpack.c.b16 %v303, %v302
    %v314 = vpack.c.b16 %v305, %v304
    %v315 = vpack.c.b16 %v307, %v306
    %324 = vmatprep.subr.bf16.mxu0 0
    %325 = vmatpush1.bf16.msra.mxu0 %v315
    %326 = vmatprep.subr.bf16.mxu0 0
    %327 = vmatpush1.bf16.msra.mxu0 %v314
    %328 = vmatprep.subr.bf16.mxu0 0
    %329 = vmatpush1.bf16.msra.mxu0 %v313
    %330 = vmatprep.subr.bf16.mxu0 0
    %331 = vmatpush1.bf16.msra.mxu0 %v312
    %332 = vmatprep.subr.bf16.mxu0 0
    %333 = vmatpush1.bf16.msra.mxu0 %v311
    %334 = vmatprep.subr.bf16.mxu0 0
    %335 = vmatpush1.bf16.msra.mxu0 %v310
    %336 = vmatprep.subr.bf16.mxu0 0
    %337 = vmatpush1.bf16.msra.mxu0 %v309
    %338 = vmatprep.subr.bf16.mxu0 0
    %339 = vmatpush1.bf16.msra.mxu0 %v308
    %340 = vmatprep.subr.bf16.mxu0 0
    %341 = vmatpush2.bf16.msra.mxu0 0
    %342 = vmatprep.subr.bf16.mxu0 0
    %343 = vmatpush2.bf16.msra.mxu0 0
    %344 = vmatprep.subr.bf16.mxu0 0
    %345 = vmatpush2.bf16.msra.mxu0 0
    %346 = vmatprep.subr.bf16.mxu0 0
    %347 = vmatpush2.bf16.msra.mxu0 0
    %348 = vmatprep.subr.bf16.mxu0 0
    %349 = vmatpush2.bf16.msra.mxu0 0
    %350 = vmatprep.subr.bf16.mxu0 0
    %351 = vmatpush2.bf16.msra.mxu0 0
    %352 = vmatprep.subr.bf16.mxu0 0
    %353 = vmatpush2.bf16.msra.mxu0 0
    %354 = vmatprep.subr.bf16.mxu0 0
    %355 = vmatpush2.bf16.msra.mxu0 0
    %356 = vmatprep.mubr.bf16.mxu0 0
    %357 = vmatmul.mubr.bf16.gmra.mxu0 %v250
    %v358 = vpop.f32.mrf.mxu0
    %v359 = vadd.f32 %v274, %v358
    %v360 = vpop.f32.mrf.mxu0
    %v361 = vpop.f32.mrf.mxu0
    %v362 = vpop.f32.mrf.mxu0
    %363 = vdwg.mxu0
    %vm364 = vcmp.ge.f32.partialorder %v359, 0.0
    %v365 = vmul.f32 %v359, 0.01
    %v366 = vsel %vm364, %v359, %v365
    %v367 = vpack.c.bf16 %v366, %v366
    %s368 = scalar_lea.vmem %s1, 192
    %v369 = vld [vmem:[%s368] sm:$0xf]
    %v370 = vld [vmem:[%s368 + $0x4] sm:$0xf]
    %v371 = vld [vmem:[%s368 + $0x8] sm:$0xf]
    %v372 = vld [vmem:[%s368 + $0xc] sm:$0xf]
    %v373 = vld [vmem:[%s368 + $0x10] sm:$0xf]
    %v374 = vld [vmem:[%s368 + $0x14] sm:$0xf]
    %v375 = vld [vmem:[%s368 + $0x18] sm:$0xf]
    %v376 = vld [vmem:[%s368 + $0x1c] sm:$0xf]
    %v377 = vld [vmem:[%s368 + $0x20] sm:$0xf]
    %v378 = vld [vmem:[%s368 + $0x24] sm:$0xf]
    %v379 = vld [vmem:[%s368 + $0x28] sm:$0xf]
    %v380 = vld [vmem:[%s368 + $0x2c] sm:$0xf]
    %v381 = vld [vmem:[%s368 + $0x30] sm:$0xf]
    %v382 = vld [vmem:[%s368 + $0x34] sm:$0xf]
    %v383 = vld [vmem:[%s368 + $0x38] sm:$0xf]
    %v384 = vld [vmem:[%s368 + $0x3c] sm:$0xf]
    %s385 = scalar_lea.vmem %s2, 3
    %v386 = vld [vmem:[%s385] sm:$0x1]
    %v388 = vlaneseq
    %v389 = vshrl.u32 %v388, 7
    %v390 = vsub.s32 0, %v389
    %v391 = vrot.slane %v386, %v390
    %v409 = vunpack.c.l.b16 %v369
    %v410 = vunpack.c.l.b16 %v370
    %v411 = vunpack.c.l.b16 %v371
    %v412 = vunpack.c.l.b16 %v372
    %v413 = vunpack.c.l.b16 %v373
    %v414 = vunpack.c.l.b16 %v374
    %v415 = vunpack.c.l.b16 %v375
    %v416 = vunpack.c.l.b16 %v376
    %v417 = vunpack.c.l.b16 %v377
    %v418 = vunpack.c.l.b16 %v378
    %v419 = vunpack.c.l.b16 %v379
    %v420 = vunpack.c.l.b16 %v380
    %v421 = vunpack.c.l.b16 %v381
    %v422 = vunpack.c.l.b16 %v382
    %v423 = vunpack.c.l.b16 %v383
    %v424 = vunpack.c.l.b16 %v384
    %v425 = vpack.c.b16 %v410, %v409
    %v426 = vpack.c.b16 %v412, %v411
    %v427 = vpack.c.b16 %v414, %v413
    %v428 = vpack.c.b16 %v416, %v415
    %v429 = vpack.c.b16 %v418, %v417
    %v430 = vpack.c.b16 %v420, %v419
    %v431 = vpack.c.b16 %v422, %v421
    %v432 = vpack.c.b16 %v424, %v423
    %441 = vmatprep.subr.bf16.mxu0 0
    %442 = vmatpush1.bf16.msra.mxu0 %v432
    %443 = vmatprep.subr.bf16.mxu0 0
    %444 = vmatpush1.bf16.msra.mxu0 %v431
    %445 = vmatprep.subr.bf16.mxu0 0
    %446 = vmatpush1.bf16.msra.mxu0 %v430
    %447 = vmatprep.subr.bf16.mxu0 0
    %448 = vmatpush1.bf16.msra.mxu0 %v429
    %449 = vmatprep.subr.bf16.mxu0 0
    %450 = vmatpush1.bf16.msra.mxu0 %v428
    %451 = vmatprep.subr.bf16.mxu0 0
    %452 = vmatpush1.bf16.msra.mxu0 %v427
    %453 = vmatprep.subr.bf16.mxu0 0
    %454 = vmatpush1.bf16.msra.mxu0 %v426
    %455 = vmatprep.subr.bf16.mxu0 0
    %456 = vmatpush1.bf16.msra.mxu0 %v425
    %457 = vmatprep.subr.bf16.mxu0 0
    %458 = vmatpush2.bf16.msra.mxu0 0
    %459 = vmatprep.subr.bf16.mxu0 0
    %460 = vmatpush2.bf16.msra.mxu0 0
    %461 = vmatprep.subr.bf16.mxu0 0
    %462 = vmatpush2.bf16.msra.mxu0 0
    %463 = vmatprep.subr.bf16.mxu0 0
    %464 = vmatpush2.bf16.msra.mxu0 0
    %465 = vmatprep.subr.bf16.mxu0 0
    %466 = vmatpush2.bf16.msra.mxu0 0
    %467 = vmatprep.subr.bf16.mxu0 0
    %468 = vmatpush2.bf16.msra.mxu0 0
    %469 = vmatprep.subr.bf16.mxu0 0
    %470 = vmatpush2.bf16.msra.mxu0 0
    %471 = vmatprep.subr.bf16.mxu0 0
    %472 = vmatpush2.bf16.msra.mxu0 0
    %473 = vmatprep.mubr.bf16.mxu0 0
    %474 = vmatmul.mubr.bf16.gmra.mxu0 %v367
    %v475 = vpop.f32.mrf.mxu0
    %v476 = vadd.f32 %v391, %v475
    %v477 = vpop.f32.mrf.mxu0
    %v478 = vpop.f32.mrf.mxu0
    %v479 = vpop.f32.mrf.mxu0
    %480 = vdwg.mxu0
    %vm481 = vcmp.ge.f32.partialorder %v476, 0.0
    %v482 = vmul.f32 %v476, 0.01
    %v483 = vsel %vm481, %v476, %v482
    %v484 = vadd.f32 %v249, %v483
    %485 = vst [vmem:[#allocation2] sm:$0xff] %v484
    // Predicated region
    $region14: #{linear_block.1} parent=1 // pred_check
      _
    $region15: #{linear_block.1} parent=1 // pred_check_branch
      %487 = sbr.rel (0) target = $region17
    $region16: #{linear_block.1} parent=1 // pred_region
      %s489 = ssub.s32 128, 128
      %490 = vsyncadd [#allocation3], %s489
      %s492 = sshll.u32 [#allocation2], 4
      %s493 = int_to_ptr.vmem [resolvable:$true] %s492
      %495 = dma.vmem_to_hbm [thread:$0]  %s493, 128, %s3, [#allocation3]
    $region17: #{linear_block.1} parent=1 // pred_fallthru
      _
    // Predicated region
    $region18: #{linear_block.1} parent=1 // pred_check
      _
    $region19: #{linear_block.1} parent=1 // pred_check_branch
      %497 = sbr.rel (0) target = $region21
    $region20: #{linear_block.1} parent=1 // pred_region
      %498 = dma.done [#allocation3], 128
    $region21: #{linear_block.1} parent=1 // pred_fallthru
      _
    %499 = vsyncpa [#allocation3], 1

</llo_original>
